<compile_context>
chip_gen: v6e
topology: v6e:2x2x1
jax: 0.10.0
libtpu: 0.0.40
codegen_flags: <defaults>
</compile_context>

<pallas_src>
import functools

import jax
import jax.numpy as jnp
from jax.experimental import pallas as pl
from jax.experimental.pallas import tpu as pltpu


def _round_up(x, m):
    return ((x + m - 1) // m) * m


def policy_kernel(xT_ref, w1_ref, b1_ref, w2_ref, b2_ref, out_ref):
    xT = xT_ref[...]            # (4, TB)   observations, batch on the lane axis
    w1 = w1_ref[...]            # (128, 4)  PyTorch (out, in) layout
    b1 = b1_ref[...]            # (128, 1)
    w2 = w2_ref[...]            # (2, 128)
    b2 = b2_ref[...]            # (2, 1)

    # affine1 + ReLU (transposed: batch stays lane-dense)
    hT = jnp.dot(w1, xT, preferred_element_type=jnp.float32) + b1      # (128, TB)
    hT = jnp.maximum(hT, 0.0)

    # affine2
    sT = jnp.dot(w2, hT, preferred_element_type=jnp.float32) + b2      # (2, TB)

    # 2-class softmax == sigmoid of the logit difference (exact identity):
    #   p0 = exp(s0) / (exp(s0) + exp(s1)) = sigmoid(s0 - s1)
    # sigmoid expressed via tanh: one EUP op, numerically stable, no XLU reduce.
    diff = sT[0:1, :] - sT[1:2, :]                                      # (1, TB)
    p0 = 0.5 + 0.5 * jnp.tanh(0.5 * diff)
    out_ref[0:1, :] = p0
    out_ref[1:2, :] = 1.0 - p0


@functools.partial(jax.jit, static_argnames=("block_b",))
def policy_forward(x, w1, b1, w2, b2, *, block_b=512):
    """softmax(relu(x @ w1.T + b1) @ w2.T + b2); weights in PyTorch (out,in) layout."""
    B = x.shape[0]
    # Batch tile: multiple of 128 so batch tiles are lane-aligned; 512 gives
    # good pipelining granularity at large rollout batches without stressing
    # VMEM on any generation (whole problem is a few KiB per tile).
    tb = min(block_b, _round_up(B, 128))
    bp = _round_up(B, tb)
    grid = (bp // tb,)

    # Transpose + zero-pad the batch to a multiple of the tile (padding rows
    # are sliced off after the call).  This is layout plumbing outside the
    # kernel so the kernel's loads/stores stay lane-dense.
    xT = jnp.pad(x.astype(jnp.float32).T, ((0, 0), (0, bp - B)))        # (4, Bp)

    out_T = pl.pallas_call(
        policy_kernel,
        out_shape=jax.ShapeDtypeStruct((2, bp), jnp.float32),
        grid=grid,
        in_specs=[
            pl.BlockSpec((4, tb), lambda i: (0, i)),        # x tile: streamed per step
            pl.BlockSpec((128, 4), lambda i: (0, 0)),       # weights/biases: constant
            pl.BlockSpec((128, 1), lambda i: (0, 0)),       #   block index -> stay
            pl.BlockSpec((2, 128), lambda i: (0, 0)),       #   resident in VMEM,
            pl.BlockSpec((2, 1), lambda i: (0, 0)),         #   no per-tile re-DMA
        ],
        out_specs=pl.BlockSpec((2, tb), lambda i: (0, i)),
        compiler_params=pltpu.CompilerParams(
            dimension_semantics=("parallel",),              # shards over 2 TCs on v7x
        ),
    )(xT, w1, b1.reshape(128, 1), w2, b2.reshape(2, 1))

    return out_T[:, :B].T                                   # (B, 2)


def init_params(key):
    """Deterministic init mimicking nn.Linear's U(-1/sqrt(fan_in), +1/sqrt(fan_in)).

    Weights kept in PyTorch (out_features, in_features) layout.
    """
    k1, k2, k3, k4 = jax.random.split(key, 4)
    bound1 = 1.0 / jnp.sqrt(4.0)
    bound2 = 1.0 / jnp.sqrt(128.0)
    w1 = jax.random.uniform(k1, (128, 4), jnp.float32, -bound1, bound1)
    b1 = jax.random.uniform(k2, (128,), jnp.float32, -bound1, bound1)
    w2 = jax.random.uniform(k3, (2, 128), jnp.float32, -bound2, bound2)
    b2 = jax.random.uniform(k4, (2,), jnp.float32, -bound2, bound2)
    return w1, b1, w2, b2


def reference_forward(x, w1, b1, w2, b2):
    h = jnp.maximum(x @ w1.T + b1, 0.0)
    s = h @ w2.T + b2
    return jax.nn.softmax(s, axis=-1)


if __name__ == "__main__":
    key = jax.random.PRNGKey(0)
    k_params, k_x = jax.random.split(key)

    w1, b1, w2, b2 = init_params(k_params)

    # CartPole observations: (batch, 4)
    B = 8
    x = jax.random.normal(k_x, (B, 4), dtype=jnp.float32)

    out = policy_forward(x, w1, b1, w2, b2)
    out = jax.block_until_ready(out)

    ref = reference_forward(x, w1, b1, w2, b2)
    assert out.shape == (B, 2), out.shape
    assert jnp.allclose(out, ref, atol=1e-5, rtol=1e-5), "mismatch vs reference"
    # rows of a softmax must sum to 1
    assert jnp.allclose(jnp.sum(out, axis=-1), 1.0, atol=1e-5)

    print("KERNEL_OK")
</pallas_src>

<mosaic_0001>
module attributes {stable_mosaic.version = 11 : i64} {
  func.func @policy_kernel(%arg0: i32, %arg1: memref<4x128xf32, #tpu.memory_space<vmem>>, %arg2: memref<128x4xf32, #tpu.memory_space<vmem>>, %arg3: memref<128x1xf32, #tpu.memory_space<vmem>>, %arg4: memref<2x128xf32, #tpu.memory_space<vmem>>, %arg5: memref<2x1xf32, #tpu.memory_space<vmem>>, %arg6: memref<2x128xf32, #tpu.memory_space<vmem>>) attributes {dimension_semantics = [#tpu.dimension_semantics<parallel>], iteration_bounds = array<i64: 1>, scalar_prefetch = 0 : i64, scratch_operands = 0 : i64, tpu.core_type = #tpu.core_type<tc>, window_params = [{transform_indices = @transform_0, window_bounds = array<i64: 4, 128>}, {pipeline_mode = #tpu.pipeline_mode<synchronous>, transform_indices = @transform_1, window_bounds = array<i64: 128, 4>}, {pipeline_mode = #tpu.pipeline_mode<synchronous>, transform_indices = @transform_2, window_bounds = array<i64: 128, 1>}, {pipeline_mode = #tpu.pipeline_mode<synchronous>, transform_indices = @transform_3, window_bounds = array<i64: 2, 128>}, {pipeline_mode = #tpu.pipeline_mode<synchronous>, transform_indices = @transform_4, window_bounds = array<i64: 2, 1>}, {transform_indices = @transform_5, window_bounds = array<i64: 2, 128>}]} {
    %c0 = arith.constant 0 : index
    %c0_0 = arith.constant 0 : index
    %0 = vector.load %arg1[%c0, %c0_0] : memref<4x128xf32, #tpu.memory_space<vmem>>, vector<4x128xf32>
    %c0_1 = arith.constant 0 : index
    %c0_2 = arith.constant 0 : index
    %1 = vector.load %arg2[%c0_1, %c0_2] : memref<128x4xf32, #tpu.memory_space<vmem>>, vector<128x4xf32>
    %c0_3 = arith.constant 0 : index
    %c0_4 = arith.constant 0 : index
    %2 = vector.load %arg3[%c0_3, %c0_4] : memref<128x1xf32, #tpu.memory_space<vmem>>, vector<128x1xf32>
    %c0_5 = arith.constant 0 : index
    %c0_6 = arith.constant 0 : index
    %3 = vector.load %arg4[%c0_5, %c0_6] : memref<2x128xf32, #tpu.memory_space<vmem>>, vector<2x128xf32>
    %c0_7 = arith.constant 0 : index
    %c0_8 = arith.constant 0 : index
    %4 = vector.load %arg5[%c0_7, %c0_8] : memref<2x1xf32, #tpu.memory_space<vmem>>, vector<2x1xf32>
    %cst = arith.constant dense<0.000000e+00> : vector<128x128xf32>
    %5 = tpu.matmul %1, %0, %cst {dimension_numbers = #tpu.dot_dimension_numbers<[1], [0], [0], [1], [0, 0, 1, 1], [], []>} : vector<128x4xf32>, vector<4x128xf32>, vector<128x128xf32> -> vector<128x128xf32>
    %6 = vector.broadcast %2 : vector<128x1xf32> to vector<128x128xf32>
    %7 = arith.addf %5, %6 : vector<128x128xf32>
    %cst_9 = arith.constant 0.000000e+00 : f32
    %8 = vector.broadcast %cst_9 : f32 to vector<128x128xf32>
    %9 = arith.maximumf %7, %8 : vector<128x128xf32>
    %cst_10 = arith.constant dense<0.000000e+00> : vector<2x128xf32>
    %10 = tpu.matmul %3, %9, %cst_10 {dimension_numbers = #tpu.dot_dimension_numbers<[1], [0], [0], [1], [0, 0, 1, 1], [], []>} : vector<2x128xf32>, vector<128x128xf32>, vector<2x128xf32> -> vector<2x128xf32>
    %11 = vector.broadcast %4 : vector<2x1xf32> to vector<2x128xf32>
    %12 = arith.addf %10, %11 : vector<2x128xf32>
    %13 = vector.extract_strided_slice %12 {offsets = [0, 0], sizes = [1, 128], strides = [1, 1]} : vector<2x128xf32> to vector<1x128xf32>
    %14 = vector.extract_strided_slice %12 {offsets = [1, 0], sizes = [1, 128], strides = [1, 1]} : vector<2x128xf32> to vector<1x128xf32>
    %15 = arith.subf %13, %14 : vector<1x128xf32>
    %cst_11 = arith.constant 5.000000e-01 : f32
    %16 = vector.broadcast %cst_11 : f32 to vector<1x128xf32>
    %17 = arith.mulf %16, %15 : vector<1x128xf32>
    %18 = math.tanh %17 : vector<1x128xf32>
    %cst_12 = arith.constant 5.000000e-01 : f32
    %19 = vector.broadcast %cst_12 : f32 to vector<1x128xf32>
    %20 = arith.mulf %19, %18 : vector<1x128xf32>
    %cst_13 = arith.constant 5.000000e-01 : f32
    %21 = vector.broadcast %cst_13 : f32 to vector<1x128xf32>
    %22 = arith.addf %21, %20 : vector<1x128xf32>
    %c0_14 = arith.constant 0 : index
    %c0_15 = arith.constant 0 : index
    %23 = vector.load %arg6[%c0_14, %c0_15] : memref<2x128xf32, #tpu.memory_space<vmem>>, vector<1x128xf32>
    tpu.vector_store %arg6[%c0_14, %c0_15], %22 {strides = array<i32>} : memref<2x128xf32, #tpu.memory_space<vmem>>, vector<1x128xf32>,
    %cst_16 = arith.constant 1.000000e+00 : f32
    %24 = vector.broadcast %cst_16 : f32 to vector<1x128xf32>
    %25 = arith.subf %24, %22 : vector<1x128xf32>
    %c1 = arith.constant 1 : index
    %c0_17 = arith.constant 0 : index
    %26 = vector.load %arg6[%c1, %c0_17] : memref<2x128xf32, #tpu.memory_space<vmem>>, vector<1x128xf32>
    tpu.vector_store %arg6[%c1, %c0_17], %25 {strides = array<i32>} : memref<2x128xf32, #tpu.memory_space<vmem>>, vector<1x128xf32>,
    return
  }
  func.func @transform_0(%arg0: i32) -> (i32, i32) {
    %c0_i32 = arith.constant 0 : i32
    %c0_i32_0 = arith.constant 0 : i32
    return %c0_i32, %arg0 : i32, i32
  }
  func.func @transform_1(%arg0: i32) -> (i32, i32) {
    %c0_i32 = arith.constant 0 : i32
    %c0_i32_0 = arith.constant 0 : i32
    %c0_i32_1 = arith.constant 0 : i32
    return %c0_i32, %c0_i32_0 : i32, i32
  }
  func.func @transform_2(%arg0: i32) -> (i32, i32) {
    %c0_i32 = arith.constant 0 : i32
    %c0_i32_0 = arith.constant 0 : i32
    %c0_i32_1 = arith.constant 0 : i32
    return %c0_i32, %c0_i32_0 : i32, i32
  }
  func.func @transform_3(%arg0: i32) -> (i32, i32) {
    %c0_i32 = arith.constant 0 : i32
    %c0_i32_0 = arith.constant 0 : i32
    %c0_i32_1 = arith.constant 0 : i32
    return %c0_i32, %c0_i32_0 : i32, i32
  }
  func.func @transform_4(%arg0: i32) -> (i32, i32) {
    %c0_i32 = arith.constant 0 : i32
    %c0_i32_0 = arith.constant 0 : i32
    %c0_i32_1 = arith.constant 0 : i32
    return %c0_i32, %c0_i32_0 : i32, i32
  }
  func.func @transform_5(%arg0: i32) -> (i32, i32) {
    %c0_i32 = arith.constant 0 : i32
    %c0_i32_0 = arith.constant 0 : i32
    return %c0_i32, %arg0 : i32, i32
  }
}

</mosaic_0001>

<llo_original>
// kernel: policy_forward.1
$region0: #{policy_forward.1}
  #allocation0 [shape = 'u32[]', space=smem, size = 0x4, offset = 0x4, fixed_abs, tag = 'smem constant byte address 0x4 - core index']
  #allocation1 [shape = 'u32[144,128]{1,0:T(1,128)}', space=vmem, size = 0x12000, scoped, tag = 'internal scratch']
  %s0 = inlined_call_operand.vmem [shape: f32[4,128], index: 0, kind: input, shape index: {}]
  %s1 = inlined_call_operand.vmem [shape: f32[128,4], index: 1, kind: input, shape index: {}]
  %s2 = inlined_call_operand.vmem [shape: f32[128,1], index: 2, kind: input, shape index: {}]
  %s3 = inlined_call_operand.vmem [shape: f32[2,128], index: 3, kind: input, shape index: {}]
  %s4 = inlined_call_operand.vmem [shape: f32[2,1], index: 4, kind: input, shape index: {}]
  %s5 = inlined_call_operand.vmem [shape: f32[2,128], index: 5, kind: output, shape index: {}]
  %s6 = sld [smem:[#allocation0]]
  $region30: #{policy_forward.1} parent=0
    _
  %s8 = ssub.s32 1, %s6
  %s9 = scalar_select 0, %s8, %s6
  // Predicated region
  $region2: #{policy_forward.1} parent=0 // pred_check
    _
  $region3: #{policy_forward.1} parent=0 // pred_check_branch
    %11 = sbr.rel (0) target = $region5
  $region4: #{policy_forward.1} parent=0 // pred_region
    _
  $region5: #{policy_forward.1} parent=0 // pred_fallthru
    _
  // Predicated region
  $region6: #{policy_forward.1} parent=0 // pred_check
    _
  $region7: #{policy_forward.1} parent=0 // pred_check_branch
    %13 = sbr.rel (0) target = $region9
  $region8: #{policy_forward.1} parent=0 // pred_region
    _
  $region9: #{policy_forward.1} parent=0 // pred_fallthru
    _
  // Predicated region
  $region10: #{policy_forward.1} parent=0 // pred_check
    _
  $region11: #{policy_forward.1} parent=0 // pred_check_branch
    %15 = sbr.rel (0) target = $region13
  $region12: #{policy_forward.1} parent=0 // pred_region
    _
  $region13: #{policy_forward.1} parent=0 // pred_fallthru
    _
  // Predicated region
  $region14: #{policy_forward.1} parent=0 // pred_check
    _
  $region15: #{policy_forward.1} parent=0 // pred_check_branch
    %17 = sbr.rel (0) target = $region17
  $region16: #{policy_forward.1} parent=0 // pred_region
    _
  $region17: #{policy_forward.1} parent=0 // pred_fallthru
    _
  // Predicated region
  $region18: #{policy_forward.1} parent=0 // pred_check
    _
  $region19: #{policy_forward.1} parent=0 // pred_check_branch
    %19 = sbr.rel (0) target = $region21
  $region20: #{policy_forward.1} parent=0 // pred_region
    _
  $region21: #{policy_forward.1} parent=0 // pred_fallthru
    _
  %v20 = vld [vmem:[%s0] sm:$0xf]
  %v21 = vld [vmem:[%s1] sm:$0xff]
  %v22 = vld [vmem:[%s1 + $0x8] sm:$0xff]
  %v23 = vld [vmem:[%s1 + $0x10] sm:$0xff]
  %v24 = vld [vmem:[%s1 + $0x18] sm:$0xff]
  %v25 = vld [vmem:[%s1 + $0x20] sm:$0xff]
  %v26 = vld [vmem:[%s1 + $0x28] sm:$0xff]
  %v27 = vld [vmem:[%s1 + $0x30] sm:$0xff]
  %v28 = vld [vmem:[%s1 + $0x38] sm:$0xff]
  %v29 = vld [vmem:[%s1 + $0x40] sm:$0xff]
  %v30 = vld [vmem:[%s1 + $0x48] sm:$0xff]
  %v31 = vld [vmem:[%s1 + $0x50] sm:$0xff]
  %v32 = vld [vmem:[%s1 + $0x58] sm:$0xff]
  %v33 = vld [vmem:[%s1 + $0x60] sm:$0xff]
  %v34 = vld [vmem:[%s1 + $0x68] sm:$0xff]
  %v35 = vld [vmem:[%s1 + $0x70] sm:$0xff]
  %v36 = vld [vmem:[%s1 + $0x78] sm:$0xff]
  %v37 = vld [vmem:[%s2] sm:$0xff]
  %v38 = vld [vmem:[%s2 + $0x8] sm:$0xff]
  %v39 = vld [vmem:[%s2 + $0x10] sm:$0xff]
  %v40 = vld [vmem:[%s2 + $0x18] sm:$0xff]
  %v41 = vld [vmem:[%s2 + $0x20] sm:$0xff]
  %v42 = vld [vmem:[%s2 + $0x28] sm:$0xff]
  %v43 = vld [vmem:[%s2 + $0x30] sm:$0xff]
  %v44 = vld [vmem:[%s2 + $0x38] sm:$0xff]
  %v45 = vld [vmem:[%s2 + $0x40] sm:$0xff]
  %v46 = vld [vmem:[%s2 + $0x48] sm:$0xff]
  %v47 = vld [vmem:[%s2 + $0x50] sm:$0xff]
  %v48 = vld [vmem:[%s2 + $0x58] sm:$0xff]
  %v49 = vld [vmem:[%s2 + $0x60] sm:$0xff]
  %v50 = vld [vmem:[%s2 + $0x68] sm:$0xff]
  %v51 = vld [vmem:[%s2 + $0x70] sm:$0xff]
  %v52 = vld [vmem:[%s2 + $0x78] sm:$0xff]
  %v53 = vld [vmem:[%s3] sm:$0x3]
  %v54 = vld [vmem:[%s4] sm:$0x3]
  %56 = vset.pattern.permute.xlu0 0
  %57 = vperm.xlu0 %56, %v37
  %v58 = vpop.permute.xlu0 %57
  %61 = vset.pattern.permute.xlu0 0
  %62 = vperm.xlu0 %61, %v38
  %v63 = vpop.permute.xlu0 %62
  %66 = vset.pattern.permute.xlu0 0
  %67 = vperm.xlu0 %66, %v39
  %v68 = vpop.permute.xlu0 %67
  %71 = vset.pattern.permute.xlu0 0
  %72 = vperm.xlu0 %71, %v40
  %v73 = vpop.permute.xlu0 %72
  %76 = vset.pattern.permute.xlu0 0
  %77 = vperm.xlu0 %76, %v41
  %v78 = vpop.permute.xlu0 %77
  %81 = vset.pattern.permute.xlu0 0
  %82 = vperm.xlu0 %81, %v42
  %v83 = vpop.permute.xlu0 %82
  %86 = vset.pattern.permute.xlu0 0
  %87 = vperm.xlu0 %86, %v43
  %v88 = vpop.permute.xlu0 %87
  %91 = vset.pattern.permute.xlu0 0
  %92 = vperm.xlu0 %91, %v44
  %v93 = vpop.permute.xlu0 %92
  %96 = vset.pattern.permute.xlu0 0
  %97 = vperm.xlu0 %96, %v45
  %v98 = vpop.permute.xlu0 %97
  %101 = vset.pattern.permute.xlu0 0
  %102 = vperm.xlu0 %101, %v46
  %v103 = vpop.permute.xlu0 %102
  %106 = vset.pattern.permute.xlu0 0
  %107 = vperm.xlu0 %106, %v47
  %v108 = vpop.permute.xlu0 %107
  %111 = vset.pattern.permute.xlu0 0
  %112 = vperm.xlu0 %111, %v48
  %v113 = vpop.permute.xlu0 %112
  %116 = vset.pattern.permute.xlu0 0
  %117 = vperm.xlu0 %116, %v49
  %v118 = vpop.permute.xlu0 %117
  %121 = vset.pattern.permute.xlu0 0
  %122 = vperm.xlu0 %121, %v50
  %v123 = vpop.permute.xlu0 %122
  %126 = vset.pattern.permute.xlu0 0
  %127 = vperm.xlu0 %126, %v51
  %v128 = vpop.permute.xlu0 %127
  %131 = vset.pattern.permute.xlu0 0
  %132 = vperm.xlu0 %131, %v52
  %v133 = vpop.permute.xlu0 %132
  %vm135 = vcmask 31744
  %v137 = vsel %vm135, %v21, 0
  %v140 = vsel %vm135, %v22, 0
  %v143 = vsel %vm135, %v23, 0
  %v146 = vsel %vm135, %v24, 0
  %v149 = vsel %vm135, %v25, 0
  %v152 = vsel %vm135, %v26, 0
  %v155 = vsel %vm135, %v27, 0
  %v158 = vsel %vm135, %v28, 0
  %v161 = vsel %vm135, %v29, 0
  %v164 = vsel %vm135, %v30, 0
  %v167 = vsel %vm135, %v31, 0
  %v170 = vsel %vm135, %v32, 0
  %v173 = vsel %vm135, %v33, 0
  %v176 = vsel %vm135, %v34, 0
  %v179 = vsel %vm135, %v35, 0
  %v182 = vsel %vm135, %v36, 0
  %vm184 = vcmask 1043456
  %v186 = vsel %vm184, %v20, 0
  %188 = vmatprep.subr.mxu0 0.0
  %189 = vmatpush1.msra.mxu0 0.0
  %190 = vmatprep.subr.mxu0 0.0
  %191 = vmatpush1.msra.mxu0 0.0
  %192 = vmatprep.subr.mxu0 0.0
  %193 = vmatpush1.msra.mxu0 0.0
  %194 = vmatprep.subr.mxu0 0.0
  %195 = vmatpush1.msra.mxu0 0.0
  %196 = vmatprep.subr.mxu0 0.0
  %197 = vmatpush1.msra.mxu0 0.0
  %198 = vmatprep.subr.mxu0 0.0
  %199 = vmatpush1.msra.mxu0 0.0
  %200 = vmatprep.subr.mxu0 0.0
  %201 = vmatpush1.msra.mxu0 0.0
  %202 = vmatprep.subr.mxu0 0.0
  %203 = vmatpush1.msra.mxu0 0.0
  %204 = vmatprep.subr.mxu0 0.0
  %205 = vmatpush1.msra.mxu0 0.0
  %206 = vmatprep.subr.mxu0 0.0
  %207 = vmatpush1.msra.mxu0 0.0
  %208 = vmatprep.subr.mxu0 0.0
  %209 = vmatpush1.msra.mxu0 0.0
  %210 = vmatprep.subr.mxu0 0.0
  %211 = vmatpush1.msra.mxu0 0.0
  %212 = vmatprep.subr.mxu0 0.0
  %213 = vmatpush1.msra.mxu0 0.0
  %214 = vmatprep.subr.mxu0 0.0
  %215 = vmatpush1.msra.mxu0 0.0
  %216 = vmatprep.subr.mxu0 0.0
  %217 = vmatpush1.msra.mxu0 0.0
  %218 = vmatprep.subr.mxu0 0.0
  %219 = vmatpush1.msra.mxu0 %v186
  %220 = vmatprep.subr.mxu0 0.0
  %221 = vmatpush2.msra.mxu0 0.0
  %222 = vmatprep.subr.mxu0 0.0
  %223 = vmatpush2.msra.mxu0 0.0
  %224 = vmatprep.subr.mxu0 0.0
  %225 = vmatpush2.msra.mxu0 0.0
  %226 = vmatprep.subr.mxu0 0.0
  %227 = vmatpush2.msra.mxu0 0.0
  %228 = vmatprep.subr.mxu0 0.0
  %229 = vmatpush2.msra.mxu0 0.0
  %230 = vmatprep.subr.mxu0 0.0
  %231 = vmatpush2.msra.mxu0 0.0
  %232 = vmatprep.subr.mxu0 0.0
  %233 = vmatpush2.msra.mxu0 0.0
  %234 = vmatprep.subr.mxu0 0.0
  %235 = vmatpush2.msra.mxu0 0.0
  %236 = vmatprep.subr.mxu0 0.0
  %237 = vmatpush2.msra.mxu0 0.0
  %238 = vmatprep.subr.mxu0 0.0
  %239 = vmatpush2.msra.mxu0 0.0
  %240 = vmatprep.subr.mxu0 0.0
  %241 = vmatpush2.msra.mxu0 0.0
  %242 = vmatprep.subr.mxu0 0.0
  %243 = vmatpush2.msra.mxu0 0.0
  %244 = vmatprep.subr.mxu0 0.0
  %245 = vmatpush2.msra.mxu0 0.0
  %246 = vmatprep.subr.mxu0 0.0
  %247 = vmatpush2.msra.mxu0 0.0
  %248 = vmatprep.subr.mxu0 0.0
  %249 = vmatpush2.msra.mxu0 0.0
  %250 = vmatprep.subr.mxu0 0.0
  %251 = vmatpush2.msra.mxu0 0.0
  %252 = vmatprep.mubr.f32.mxu0 0.0
  %253 = vmatmul.mubr.f32.gmra.mxu0 %v137
  %v254 = vpop.f32.mrf.mxu0
  %v255 = vadd.f32 %v58, %v254
  %v256 = vpop.f32.mrf.mxu0
  %257 = vmatprep.mubr.f32.mxu0 0.0
  %258 = vmatmul.mubr.f32.gmra.mxu0 %v140
  %v259 = vpop.f32.mrf.mxu0
  %v260 = vadd.f32 %v63, %v259
  %v261 = vpop.f32.mrf.mxu0
  %262 = vmatprep.mubr.f32.mxu0 0.0
  %263 = vmatmul.mubr.f32.gmra.mxu0 %v143
  %v264 = vpop.f32.mrf.mxu0
  %v265 = vadd.f32 %v68, %v264
  %v266 = vpop.f32.mrf.mxu0
  %267 = vmatprep.mubr.f32.mxu0 0.0
  %268 = vmatmul.mubr.f32.gmra.mxu0 %v146
  %v269 = vpop.f32.mrf.mxu0
  %v270 = vadd.f32 %v73, %v269
  %v271 = vpop.f32.mrf.mxu0
  %272 = vmatprep.mubr.f32.mxu0 0.0
  %273 = vmatmul.mubr.f32.gmra.mxu0 %v149
  %v274 = vpop.f32.mrf.mxu0
  %v275 = vadd.f32 %v78, %v274
  %v276 = vpop.f32.mrf.mxu0
  %277 = vmatprep.mubr.f32.mxu0 0.0
  %278 = vmatmul.mubr.f32.gmra.mxu0 %v152
  %v279 = vpop.f32.mrf.mxu0
  %v280 = vadd.f32 %v83, %v279
  %v281 = vpop.f32.mrf.mxu0
  %282 = vmatprep.mubr.f32.mxu0 0.0
  %283 = vmatmul.mubr.f32.gmra.mxu0 %v155
  %v284 = vpop.f32.mrf.mxu0
  %v285 = vadd.f32 %v88, %v284
  %v286 = vpop.f32.mrf.mxu0
  %287 = vmatprep.mubr.f32.mxu0 0.0
  %288 = vmatmul.mubr.f32.gmra.mxu0 %v158
  %v289 = vpop.f32.mrf.mxu0
  %v290 = vadd.f32 %v93, %v289
  %v291 = vpop.f32.mrf.mxu0
  %292 = vmatprep.mubr.f32.mxu0 0.0
  %293 = vmatmul.mubr.f32.gmra.mxu0 %v161
  %v294 = vpop.f32.mrf.mxu0
  %v295 = vadd.f32 %v98, %v294
  %v296 = vpop.f32.mrf.mxu0
  %297 = vmatprep.mubr.f32.mxu0 0.0
  %298 = vmatmul.mubr.f32.gmra.mxu0 %v164
  %v299 = vpop.f32.mrf.mxu0
  %v300 = vadd.f32 %v103, %v299
  %v301 = vpop.f32.mrf.mxu0
  %302 = vmatprep.mubr.f32.mxu0 0.0
  %303 = vmatmul.mubr.f32.gmra.mxu0 %v167
  %v304 = vpop.f32.mrf.mxu0
  %v305 = vadd.f32 %v108, %v304
  %v306 = vpop.f32.mrf.mxu0
  %307 = vmatprep.mubr.f32.mxu0 0.0
  %308 = vmatmul.mubr.f32.gmra.mxu0 %v170
  %v309 = vpop.f32.mrf.mxu0
  %v310 = vadd.f32 %v113, %v309
  %v311 = vpop.f32.mrf.mxu0
  %312 = vmatprep.mubr.f32.mxu0 0.0
  %313 = vmatmul.mubr.f32.gmra.mxu0 %v173
  %v314 = vpop.f32.mrf.mxu0
  %v315 = vadd.f32 %v118, %v314
  %v316 = vpop.f32.mrf.mxu0
  %317 = vmatprep.mubr.f32.mxu0 0.0
  %318 = vmatmul.mubr.f32.gmra.mxu0 %v176
  %v319 = vpop.f32.mrf.mxu0
  %v320 = vadd.f32 %v123, %v319
  %v321 = vpop.f32.mrf.mxu0
  %322 = vmatprep.mubr.f32.mxu0 0.0
  %323 = vmatmul.mubr.f32.gmra.mxu0 %v179
  %v324 = vpop.f32.mrf.mxu0
  %v325 = vadd.f32 %v128, %v324
  %v326 = vpop.f32.mrf.mxu0
  %327 = vmatprep.mubr.f32.mxu0 0.0
  %328 = vmatmul.mubr.f32.gmra.mxu0 %v182
  %v329 = vpop.f32.mrf.mxu0
  %v330 = vadd.f32 %v133, %v329
  %v331 = vpop.f32.mrf.mxu0
  %332 = vdwg.mxu0
  %v333 = vmax.f32 %v255, 0.0
  %v334 = vmax.f32 %v260, 0.0
  %v335 = vmax.f32 %v265, 0.0
  %v336 = vmax.f32 %v270, 0.0
  %v337 = vmax.f32 %v275, 0.0
  %v338 = vmax.f32 %v280, 0.0
  %v339 = vmax.f32 %v285, 0.0
  %v340 = vmax.f32 %v290, 0.0
  %v341 = vmax.f32 %v295, 0.0
  %v342 = vmax.f32 %v300, 0.0
  %v343 = vmax.f32 %v305, 0.0
  %v344 = vmax.f32 %v310, 0.0
  %v345 = vmax.f32 %v315, 0.0
  %v346 = vmax.f32 %v320, 0.0
  %v347 = vmax.f32 %v325, 0.0
  %v348 = vmax.f32 %v330, 0.0
  %350 = vset.pattern.permute.xlu0 0
  %351 = vperm.xlu0 %350, %v54
  %v352 = vpop.permute.xlu0 %351
  %354 = vmatprep.subr.mxu0 0.0
  %355 = vmatpush1.msra.mxu0 %v348
  %356 = vmatprep.subr.mxu0 0.0
  %357 = vmatpush1.msra.mxu0 %v347
  %358 = vmatprep.subr.mxu0 0.0
  %359 = vmatpush1.msra.mxu0 %v346
  %360 = vmatprep.subr.mxu0 0.0
  %361 = vmatpush1.msra.mxu0 %v345
  %362 = vmatprep.subr.mxu0 0.0
  %363 = vmatpush1.msra.mxu0 %v344
  %364 = vmatprep.subr.mxu0 0.0
  %365 = vmatpush1.msra.mxu0 %v343
  %366 = vmatprep.subr.mxu0 0.0
  %367 = vmatpush1.msra.mxu0 %v342
  %368 = vmatprep.subr.mxu0 0.0
  %369 = vmatpush1.msra.mxu0 %v341
  %370 = vmatprep.subr.mxu0 0.0
  %371 = vmatpush1.msra.mxu0 %v340
  %372 = vmatprep.subr.mxu0 0.0
  %373 = vmatpush1.msra.mxu0 %v339
  %374 = vmatprep.subr.mxu0 0.0
  %375 = vmatpush1.msra.mxu0 %v338
  %376 = vmatprep.subr.mxu0 0.0
  %377 = vmatpush1.msra.mxu0 %v337
  %378 = vmatprep.subr.mxu0 0.0
  %379 = vmatpush1.msra.mxu0 %v336
  %380 = vmatprep.subr.mxu0 0.0
  %381 = vmatpush1.msra.mxu0 %v335
  %382 = vmatprep.subr.mxu0 0.0
  %383 = vmatpush1.msra.mxu0 %v334
  %384 = vmatprep.subr.mxu0 0.0
  %385 = vmatpush1.msra.mxu0 %v333
  %386 = vmatprep.subr.mxu0 0.0
  %387 = vmatpush2.msra.mxu0 0.0
  %388 = vmatprep.subr.mxu0 0.0
  %389 = vmatpush2.msra.mxu0 0.0
  %390 = vmatprep.subr.mxu0 0.0
  %391 = vmatpush2.msra.mxu0 0.0
  %392 = vmatprep.subr.mxu0 0.0
  %393 = vmatpush2.msra.mxu0 0.0
  %394 = vmatprep.subr.mxu0 0.0
  %395 = vmatpush2.msra.mxu0 0.0
  %396 = vmatprep.subr.mxu0 0.0
  %397 = vmatpush2.msra.mxu0 0.0
  %398 = vmatprep.subr.mxu0 0.0
  %399 = vmatpush2.msra.mxu0 0.0
  %400 = vmatprep.subr.mxu0 0.0
  %401 = vmatpush2.msra.mxu0 0.0
  %402 = vmatprep.subr.mxu0 0.0
  %403 = vmatpush2.msra.mxu0 0.0
  %404 = vmatprep.subr.mxu0 0.0
  %405 = vmatpush2.msra.mxu0 0.0
  %406 = vmatprep.subr.mxu0 0.0
  %407 = vmatpush2.msra.mxu0 0.0
  %408 = vmatprep.subr.mxu0 0.0
  %409 = vmatpush2.msra.mxu0 0.0
  %410 = vmatprep.subr.mxu0 0.0
  %411 = vmatpush2.msra.mxu0 0.0
  %412 = vmatprep.subr.mxu0 0.0
  %413 = vmatpush2.msra.mxu0 0.0
  %414 = vmatprep.subr.mxu0 0.0
  %415 = vmatpush2.msra.mxu0 0.0
  %416 = vmatprep.subr.mxu0 0.0
  %417 = vmatpush2.msra.mxu0 0.0
  %418 = vmatprep.mubr.f32.mxu0 0.0
  %419 = vmatmul.mubr.f32.gmra.mxu0 %v53
  %v420 = vpop.f32.mrf.mxu0
  %v421 = vadd.f32 %v352, %v420
  %v422 = vpop.f32.mrf.mxu0
  %423 = vdwg.mxu0
  %v425 = vrot.slane %v421, 1
  %v427 = vsub.f32 %v421, %v425
  %v428 = vmul.f32 %v427, 0.5
  %v429 = vtanh.pop %v428
  %v430 = vmul.f32 %v429, 0.5
  %v431 = vadd.f32 %v430, 0.5
  %432 = vst [vmem:[%s5] sm:$0x1] %v431
  %v433 = vsub.f32 1.0, %v431
  %434 = vst [vmem:[%s5 + $0x1] sm:$0x1] %v433
  // Predicated region
  $region22: #{policy_forward.1} parent=0 // pred_check
    _
  $region23: #{policy_forward.1} parent=0 // pred_check_branch
    %436 = sbr.rel (0) target = $region25
  $region24: #{policy_forward.1} parent=0 // pred_region
    _
  $region25: #{policy_forward.1} parent=0 // pred_fallthru
    _
  // Predicated region
  $region26: #{policy_forward.1} parent=0 // pred_check
    _
  $region27: #{policy_forward.1} parent=0 // pred_check_branch
    %438 = sbr.rel (0) target = $region29
  $region28: #{policy_forward.1} parent=0 // pred_region
    _
  $region29: #{policy_forward.1} parent=0 // pred_fallthru
    _

</llo_original>
